<compile_context>
chip_gen: v7x
topology: tpu7x:2x2x1
jax: 0.10.0
libtpu: 0.0.40
codegen_flags: <defaults>
</compile_context>

<pallas_src>
import numpy as np
import jax
import jax.numpy as jnp
from jax import lax
from jax.experimental import pallas as pl
from jax.experimental.pallas import tpu as pltpu

# ---- module hyper-parameters (SUN-RGBD-like, kept small) -------------------
NUM_CLASS = 18
NUM_HEADING_BIN = 12
NUM_SIZE_CLUSTER = 10
HIDDEN = 128
C_OUT = 2 + 3 + NUM_HEADING_BIN * 2 + NUM_SIZE_CLUSTER * 4 + NUM_CLASS  # = 87
C_OUT_PAD = 128   # pad conv3 output channels to a lane-dense 128, slice later
BN_EPS = 1e-5


def _round_up(x, m):
    return ((x + m - 1) // m) * m


# ---------------------------------------------------------------------------
# Pallas kernel: fused 3-layer 1x1-conv MLP (BN folded) over one (b, j) tile.
# Input tile is the original NCW layout (1, HIDDEN, tn); layer 1 contracts the
# channel dim on the MXU so no HBM-side transpose is ever materialized.
# ---------------------------------------------------------------------------
def proposal_mlp_kernel(x_ref, w1_ref, b1_ref, w2_ref, b2_ref, w3_ref, b3_ref,
                        o_ref):
    x = x_ref[0].astype(jnp.bfloat16)                     # (HIDDEN, tn) bf16
    # layer 1: x^T @ W1 (contract channel/leading dims) -> (tn, HIDDEN), f32 acc
    h = lax.dot_general(x, w1_ref[...],
                        dimension_numbers=(((0,), (0,)), ((), ())),
                        preferred_element_type=jnp.float32)
    h = jnp.maximum(h + b1_ref[...], 0.0)                 # relu(bn1(conv1)), f32
    h = h.astype(jnp.bfloat16)
    h = jnp.dot(h, w2_ref[...], preferred_element_type=jnp.float32)
    h = jnp.maximum(h + b2_ref[...], 0.0)                 # relu(bn2(conv2)), f32
    h = h.astype(jnp.bfloat16)
    y = jnp.dot(h, w3_ref[...], preferred_element_type=jnp.float32) + b3_ref[...]
    o_ref[0] = y.astype(o_ref.dtype)                      # (tn, C_OUT_PAD)


def _choose_tile_n(N, B, *, tn_max=2048):
    """Pick the N-axis tile (per batch element).

    - Prefer ONE tile per batch (no per-step overhead, longest MXU M stream);
      block == full dim is always layout-legal, so ragged N needs no padding.
    - Split only when N > tn_max, or when B == 1 and a 2-way split still gives
      each TensorCore >= 512 rows (v7x megacore; harmless on v5e/v6e).
    """
    assert tn_max % 128 == 0
    if N > tn_max:
        return tn_max                                   # multiple of 128
    if B == 1 and N >= 1024:
        return min(tn_max, _round_up((N + 1) // 2, 128))
    return N                                            # block == full dim


def proposal_mlp(features_bcn, w1, b1, w2, b2, w3, b3, *,
                 tn_max=2048, out_dtype=jnp.bfloat16):
    """features_bcn: (B, HIDDEN, N) f32 (Conv1d NCW layout, unmodified).
    Weights BN-folded, (in, out) bf16; biases (1, out) f32.
    Returns (B, N, C_OUT_PAD) in out_dtype (lane-dense, padded channels)."""
    B, C, N = features_bcn.shape
    assert C == HIDDEN
    tn = _choose_tile_n(N, B, tn_max=tn_max)
    grid = (B, pl.cdiv(N, tn))
    return pl.pallas_call(
        proposal_mlp_kernel,
        out_shape=jax.ShapeDtypeStruct((B, N, C_OUT_PAD), out_dtype),
        grid=grid,
        in_specs=[
            pl.BlockSpec((1, HIDDEN, tn), lambda b, j: (b, 0, j)),
            pl.BlockSpec((HIDDEN, HIDDEN), lambda b, j: (0, 0)),
            pl.BlockSpec((1, HIDDEN), lambda b, j: (0, 0)),
            pl.BlockSpec((HIDDEN, HIDDEN), lambda b, j: (0, 0)),
            pl.BlockSpec((1, HIDDEN), lambda b, j: (0, 0)),
            pl.BlockSpec((HIDDEN, C_OUT_PAD), lambda b, j: (0, 0)),
            pl.BlockSpec((1, C_OUT_PAD), lambda b, j: (0, 0)),
        ],
        out_specs=pl.BlockSpec((1, tn, C_OUT_PAD), lambda b, j: (b, j, 0)),
        compiler_params=pltpu.CompilerParams(
            dimension_semantics=("parallel", "parallel"),
            vmem_limit_bytes=32 * 1024 * 1024),
    )(features_bcn, w1, b1, w2, b2, w3, b3)


# ---------------------------------------------------------------------------
# Deterministic parameter construction + BN folding (eval-mode BatchNorm).
# ---------------------------------------------------------------------------
def make_params(key):
    ks = jax.random.split(key, 14)
    f32 = jnp.float32

    def conv(k_w, k_b, cout, cin):
        w = jax.random.normal(k_w, (cout, cin), f32) * 0.05   # Conv1d (out,in,1) squeezed
        b = jax.random.normal(k_b, (cout,), f32) * 0.05
        return w, b

    def bn(k_g, k_b, k_m, k_v, c):
        gamma = 1.0 + 0.1 * jax.random.normal(k_g, (c,), f32)
        beta = 0.1 * jax.random.normal(k_b, (c,), f32)
        mean = 0.1 * jax.random.normal(k_m, (c,), f32)
        var = 1.0 + 0.1 * jnp.abs(jax.random.normal(k_v, (c,), f32))
        return gamma, beta, mean, var

    w1, b1 = conv(ks[0], ks[1], HIDDEN, HIDDEN)
    w2, b2 = conv(ks[2], ks[3], HIDDEN, HIDDEN)
    w3, b3 = conv(ks[4], ks[5], C_OUT, HIDDEN)
    g1, be1, m1, v1 = bn(ks[6], ks[7], ks[8], ks[9], HIDDEN)
    g2, be2, m2, v2 = bn(ks[10], ks[11], ks[12], ks[13], HIDDEN)

    # Fold BN into the preceding conv (f32 math), then cast weights to bf16.
    def fold(w, b, gamma, beta, mean, var):
        s = gamma / jnp.sqrt(var + BN_EPS)                   # (cout,)
        w_eff = (w * s[:, None]).T                           # (cin, cout)
        b_eff = (b - mean) * s + beta                        # (cout,)
        return w_eff.astype(jnp.bfloat16), b_eff[None, :].astype(f32)

    W1, B1 = fold(w1, b1, g1, be1, m1, v1)
    W2, B2 = fold(w2, b2, g2, be2, m2, v2)

    # conv3 has no BN; pad out-channels 87 -> 128 (zeros) for lane-dense output.
    W3 = jnp.zeros((HIDDEN, C_OUT_PAD), f32).at[:, :C_OUT].set(w3.T)
    B3 = jnp.zeros((1, C_OUT_PAD), f32).at[:, :C_OUT].set(b3[None, :])
    return dict(W1=W1, B1=B1, W2=W2, B2=B2,
                W3=W3.astype(jnp.bfloat16), B3=B3)


# ---------------------------------------------------------------------------
# Full forward:  fused-MLP Pallas kernel + decode_scores glue.
# ---------------------------------------------------------------------------
def proposal_module_forward(features_bcn, aggregated_vote_xyz, mean_size_arr,
                            params, *, out_dtype=jnp.bfloat16):
    """features_bcn: (B, 128, N) like PyTorch Conv1d input (vote-agg output).
       aggregated_vote_xyz: (B, N, 3).  mean_size_arr: (NUM_SIZE_CLUSTER, 3)."""
    B, C, N = features_bcn.shape
    assert C == HIDDEN

    # x_t == x.transpose(2, 1) of the PyTorch code, lane-dense & channel-padded.
    x_t = proposal_mlp(features_bcn, params["W1"], params["B1"], params["W2"],
                       params["B2"], params["W3"], params["B3"],
                       out_dtype=out_dtype)                    # (B, N, 128)

    NH, NS = NUM_HEADING_BIN, NUM_SIZE_CLUSTER
    out = {}
    out["objectness_scores"] = x_t[:, :, 0:2]
    out["center"] = aggregated_vote_xyz + x_t[:, :, 2:5]       # promotes to f32
    out["heading_scores"] = x_t[:, :, 5:5 + NH]
    hrn = x_t[:, :, 5 + NH:5 + 2 * NH]
    out["heading_residuals_normalized"] = hrn
    out["heading_residuals"] = hrn * (np.pi / NH)
    out["size_scores"] = x_t[:, :, 5 + 2 * NH:5 + 2 * NH + NS]
    srn = x_t[:, :, 5 + 2 * NH + NS:5 + 2 * NH + 4 * NS].reshape(B, N, NS, 3)
    out["size_residuals_normalized"] = srn
    out["size_residuals"] = srn * mean_size_arr[None, None, :, :]
    out["sem_cls_scores"] = x_t[:, :, 5 + 2 * NH + 4 * NS:C_OUT]
    out["aggregated_vote_xyz"] = aggregated_vote_xyz
    return out


# Pure-JAX reference of the fused MLP (matching bf16/f32 precision path).
def _mlp_ref(features_bcn, p, out_dtype=jnp.bfloat16):
    B, C, N = features_bcn.shape
    x = jnp.transpose(features_bcn, (0, 2, 1)).reshape(B * N, C)
    x = x.astype(jnp.bfloat16)
    h = jnp.dot(x, p["W1"], preferred_element_type=jnp.float32) + p["B1"]
    h = jnp.maximum(h, 0.0).astype(jnp.bfloat16)
    h = jnp.dot(h, p["W2"], preferred_element_type=jnp.float32) + p["B2"]
    h = jnp.maximum(h, 0.0).astype(jnp.bfloat16)
    y = jnp.dot(h, p["W3"], preferred_element_type=jnp.float32) + p["B3"]
    return y.astype(out_dtype).reshape(B, N, C_OUT_PAD)


def _to_f32_np(a):
    return np.asarray(a.astype(jnp.float32))


if __name__ == "__main__":
    key = jax.random.PRNGKey(0)
    k_feat, k_xyz, k_params, k_msize = jax.random.split(key, 4)

    B, N_PROPOSAL = 2, 64
    features = jax.random.normal(k_feat, (B, HIDDEN, N_PROPOSAL), jnp.float32)
    aggregated_vote_xyz = jax.random.normal(k_xyz, (B, N_PROPOSAL, 3),
                                            jnp.float32)
    mean_size_arr = jax.random.uniform(k_msize, (NUM_SIZE_CLUSTER, 3),
                                       jnp.float32, 0.5, 2.0)
    params = make_params(k_params)

    out = proposal_module_forward(features, aggregated_vote_xyz,
                                  mean_size_arr, params)
    out = jax.tree_util.tree_map(jax.block_until_ready, out)

    # sanity-check the Pallas MLP against a matching-precision JAX reference
    y_pal = proposal_mlp(features, params["W1"], params["B1"], params["W2"],
                         params["B2"], params["W3"], params["B3"])
    y_ref = _mlp_ref(features, params)
    np.testing.assert_allclose(_to_f32_np(y_pal), _to_f32_np(y_ref),
                               rtol=2e-2, atol=2e-2)

    # ragged N (not a multiple of 128): single full-dim tile per batch
    Nr = 100
    feats_r = jax.random.normal(k_feat, (B, HIDDEN, Nr), jnp.float32)
    xyz_r = jax.random.normal(k_xyz, (B, Nr, 3), jnp.float32)
    out_r = proposal_module_forward(feats_r, xyz_r, mean_size_arr, params)
    out_r = jax.tree_util.tree_map(jax.block_until_ready, out_r)
    assert out_r["sem_cls_scores"].shape == (B, Nr, NUM_CLASS)

    # partial-last-block path: force tn < N (tn=256, last tile has 44 valid rows)
    Np = 300
    feats_p = jax.random.normal(k_feat, (B, HIDDEN, Np), jnp.float32)
    y_p = proposal_mlp(feats_p, params["W1"], params["B1"], params["W2"],
                       params["B2"], params["W3"], params["B3"], tn_max=256)
    y_p_ref = _mlp_ref(feats_p, params)
    np.testing.assert_allclose(_to_f32_np(y_p), _to_f32_np(y_p_ref),
                               rtol=2e-2, atol=2e-2)

    # shape checks mirroring the PyTorch decode_scores contract
    assert out["objectness_scores"].shape == (B, N_PROPOSAL, 2)
    assert out["center"].shape == (B, N_PROPOSAL, 3)
    assert out["heading_scores"].shape == (B, N_PROPOSAL, NUM_HEADING_BIN)
    assert out["heading_residuals"].shape == (B, N_PROPOSAL, NUM_HEADING_BIN)
    assert out["size_scores"].shape == (B, N_PROPOSAL, NUM_SIZE_CLUSTER)
    assert out["size_residuals"].shape == (B, N_PROPOSAL, NUM_SIZE_CLUSTER, 3)
    assert out["sem_cls_scores"].shape == (B, N_PROPOSAL, NUM_CLASS)

    print("KERNEL_OK")
</pallas_src>

<mosaic_0001>
module attributes {stable_mosaic.version = 11 : i64} {
  func.func @proposal_mlp_kernel(%arg0: i32, %arg1: i32, %arg2: memref<1x128x64xf32, #tpu.memory_space<vmem>>, %arg3: memref<128x128xbf16, #tpu.memory_space<vmem>>, %arg4: memref<1x128xf32, #tpu.memory_space<vmem>>, %arg5: memref<128x128xbf16, #tpu.memory_space<vmem>>, %arg6: memref<1x128xf32, #tpu.memory_space<vmem>>, %arg7: memref<128x128xbf16, #tpu.memory_space<vmem>>, %arg8: memref<1x128xf32, #tpu.memory_space<vmem>>, %arg9: memref<1x64x128xbf16, #tpu.memory_space<vmem>>) attributes {dimension_semantics = [#tpu.dimension_semantics<parallel>, #tpu.dimension_semantics<parallel>], iteration_bounds = array<i64: 2, 1>, scalar_prefetch = 0 : i64, scratch_operands = 0 : i64, tpu.core_type = #tpu.core_type<tc>, window_params = [{transform_indices = @transform_0, window_bounds = array<i64: 1, 128, 64>}, {pipeline_mode = #tpu.pipeline_mode<synchronous>, transform_indices = @transform_1, window_bounds = array<i64: 128, 128>}, {pipeline_mode = #tpu.pipeline_mode<synchronous>, transform_indices = @transform_2, window_bounds = array<i64: 1, 128>}, {pipeline_mode = #tpu.pipeline_mode<synchronous>, transform_indices = @transform_3, window_bounds = array<i64: 128, 128>}, {pipeline_mode = #tpu.pipeline_mode<synchronous>, transform_indices = @transform_4, window_bounds = array<i64: 1, 128>}, {pipeline_mode = #tpu.pipeline_mode<synchronous>, transform_indices = @transform_5, window_bounds = array<i64: 128, 128>}, {pipeline_mode = #tpu.pipeline_mode<synchronous>, transform_indices = @transform_6, window_bounds = array<i64: 1, 128>}, {transform_indices = @transform_7, window_bounds = array<i64: 1, 64, 128>}]} {
    %c0 = arith.constant 0 : index
    %c0_0 = arith.constant 0 : index
    %c0_1 = arith.constant 0 : index
    %0 = vector.load %arg2[%c0, %c0_0, %c0_1] : memref<1x128x64xf32, #tpu.memory_space<vmem>>, vector<1x128x64xf32>
    %1 = vector.shape_cast %0 : vector<1x128x64xf32> to vector<128x64xf32>
    %2 = arith.truncf %1 : vector<128x64xf32> to vector<128x64xbf16>
    %c0_2 = arith.constant 0 : index
    %c0_3 = arith.constant 0 : index
    %3 = vector.load %arg3[%c0_2, %c0_3] : memref<128x128xbf16, #tpu.memory_space<vmem>>, vector<128x128xbf16>
    %cst = arith.constant dense<0.000000e+00> : vector<64x128xf32>
    %4 = tpu.matmul %2, %3, %cst {dimension_numbers = #tpu.dot_dimension_numbers<[0], [0], [1], [1], [0, 1, 1, 1], [], []>} : vector<128x64xbf16>, vector<128x128xbf16>, vector<64x128xf32> -> vector<64x128xf32>
    %c0_4 = arith.constant 0 : index
    %c0_5 = arith.constant 0 : index
    %5 = vector.load %arg4[%c0_4, %c0_5] : memref<1x128xf32, #tpu.memory_space<vmem>>, vector<1x128xf32>
    %6 = vector.broadcast %5 : vector<1x128xf32> to vector<64x128xf32>
    %7 = arith.addf %4, %6 : vector<64x128xf32>
    %cst_6 = arith.constant 0.000000e+00 : f32
    %8 = vector.broadcast %cst_6 : f32 to vector<64x128xf32>
    %9 = arith.maximumf %7, %8 : vector<64x128xf32>
    %10 = arith.truncf %9 : vector<64x128xf32> to vector<64x128xbf16>
    %c0_7 = arith.constant 0 : index
    %c0_8 = arith.constant 0 : index
    %11 = vector.load %arg5[%c0_7, %c0_8] : memref<128x128xbf16, #tpu.memory_space<vmem>>, vector<128x128xbf16>
    %cst_9 = arith.constant dense<0.000000e+00> : vector<64x128xf32>
    %12 = tpu.matmul %10, %11, %cst_9 {dimension_numbers = #tpu.dot_dimension_numbers<[1], [0], [0], [1], [0, 0, 1, 1], [], []>} : vector<64x128xbf16>, vector<128x128xbf16>, vector<64x128xf32> -> vector<64x128xf32>
    %c0_10 = arith.constant 0 : index
    %c0_11 = arith.constant 0 : index
    %13 = vector.load %arg6[%c0_10, %c0_11] : memref<1x128xf32, #tpu.memory_space<vmem>>, vector<1x128xf32>
    %14 = vector.broadcast %13 : vector<1x128xf32> to vector<64x128xf32>
    %15 = arith.addf %12, %14 : vector<64x128xf32>
    %cst_12 = arith.constant 0.000000e+00 : f32
    %16 = vector.broadcast %cst_12 : f32 to vector<64x128xf32>
    %17 = arith.maximumf %15, %16 : vector<64x128xf32>
    %18 = arith.truncf %17 : vector<64x128xf32> to vector<64x128xbf16>
    %c0_13 = arith.constant 0 : index
    %c0_14 = arith.constant 0 : index
    %19 = vector.load %arg7[%c0_13, %c0_14] : memref<128x128xbf16, #tpu.memory_space<vmem>>, vector<128x128xbf16>
    %cst_15 = arith.constant dense<0.000000e+00> : vector<64x128xf32>
    %20 = tpu.matmul %18, %19, %cst_15 {dimension_numbers = #tpu.dot_dimension_numbers<[1], [0], [0], [1], [0, 0, 1, 1], [], []>} : vector<64x128xbf16>, vector<128x128xbf16>, vector<64x128xf32> -> vector<64x128xf32>
    %c0_16 = arith.constant 0 : index
    %c0_17 = arith.constant 0 : index
    %21 = vector.load %arg8[%c0_16, %c0_17] : memref<1x128xf32, #tpu.memory_space<vmem>>, vector<1x128xf32>
    %22 = vector.broadcast %21 : vector<1x128xf32> to vector<64x128xf32>
    %23 = arith.addf %20, %22 : vector<64x128xf32>
    %24 = arith.truncf %23 : vector<64x128xf32> to vector<64x128xbf16>
    %c0_18 = arith.constant 0 : index
    %c0_19 = arith.constant 0 : index
    %c0_20 = arith.constant 0 : index
    %25 = vector.load %arg9[%c0_18, %c0_19, %c0_20] : memref<1x64x128xbf16, #tpu.memory_space<vmem>>, vector<1x64x128xbf16>
    %26 = vector.shape_cast %25 : vector<1x64x128xbf16> to vector<64x128xbf16>
    %27 = vector.shape_cast %24 : vector<64x128xbf16> to vector<1x64x128xbf16>
    tpu.vector_store %arg9[%c0_18, %c0_19, %c0_20], %27 {strides = array<i32>} : memref<1x64x128xbf16, #tpu.memory_space<vmem>>, vector<1x64x128xbf16>,
    return
  }
  func.func @transform_0(%arg0: i32, %arg1: i32) -> (i32, i32, i32) {
    %c0_i32 = arith.constant 0 : i32
    %c0_i32_0 = arith.constant 0 : i32
    return %arg0, %c0_i32, %arg1 : i32, i32, i32
  }
  func.func @transform_1(%arg0: i32, %arg1: i32) -> (i32, i32) {
    %c0_i32 = arith.constant 0 : i32
    %c0_i32_0 = arith.constant 0 : i32
    %c0_i32_1 = arith.constant 0 : i32
    return %c0_i32, %c0_i32_0 : i32, i32
  }
  func.func @transform_2(%arg0: i32, %arg1: i32) -> (i32, i32) {
    %c0_i32 = arith.constant 0 : i32
    %c0_i32_0 = arith.constant 0 : i32
    %c0_i32_1 = arith.constant 0 : i32
    return %c0_i32, %c0_i32_0 : i32, i32
  }
  func.func @transform_3(%arg0: i32, %arg1: i32) -> (i32, i32) {
    %c0_i32 = arith.constant 0 : i32
    %c0_i32_0 = arith.constant 0 : i32
    %c0_i32_1 = arith.constant 0 : i32
    return %c0_i32, %c0_i32_0 : i32, i32
  }
  func.func @transform_4(%arg0: i32, %arg1: i32) -> (i32, i32) {
    %c0_i32 = arith.constant 0 : i32
    %c0_i32_0 = arith.constant 0 : i32
    %c0_i32_1 = arith.constant 0 : i32
    return %c0_i32, %c0_i32_0 : i32, i32
  }
  func.func @transform_5(%arg0: i32, %arg1: i32) -> (i32, i32) {
    %c0_i32 = arith.constant 0 : i32
    %c0_i32_0 = arith.constant 0 : i32
    %c0_i32_1 = arith.constant 0 : i32
    return %c0_i32, %c0_i32_0 : i32, i32
  }
  func.func @transform_6(%arg0: i32, %arg1: i32) -> (i32, i32) {
    %c0_i32 = arith.constant 0 : i32
    %c0_i32_0 = arith.constant 0 : i32
    %c0_i32_1 = arith.constant 0 : i32
    return %c0_i32, %c0_i32_0 : i32, i32
  }
  func.func @transform_7(%arg0: i32, %arg1: i32) -> (i32, i32, i32) {
    %c0_i32 = arith.constant 0 : i32
    %c0_i32_0 = arith.constant 0 : i32
    return %arg0, %arg1, %c0_i32 : i32, i32, i32
  }
}

</mosaic_0001>

<llo_original>
// kernel: tpu_custom_call.1
$region0: #{tpu_custom_call.1}
  #allocation0 [shape = 'u32[]', space=smem, size = 0x4, offset = 0x4, fixed_abs, tag = 'smem constant byte address 0x4 - core index']
  #allocation1 [shape = 'u32[144,128]{1,0:T(1,128)}', space=vmem, size = 0x12000, scoped, tag = 'internal scratch']
  %s0 = inlined_call_operand.vmem [shape: f32[2,128,64], index: 0, kind: input, shape index: {}]
  %s1 = inlined_call_operand.vmem [shape: bf16[128,128], index: 1, kind: input, shape index: {}]
  %s2 = inlined_call_operand.vmem [shape: f32[1,128], index: 2, kind: input, shape index: {}]
  %s3 = inlined_call_operand.vmem [shape: bf16[128,128], index: 3, kind: input, shape index: {}]
  %s4 = inlined_call_operand.vmem [shape: f32[1,128], index: 4, kind: input, shape index: {}]
  %s5 = inlined_call_operand.vmem [shape: bf16[128,128], index: 5, kind: input, shape index: {}]
  %s6 = inlined_call_operand.vmem [shape: f32[1,128], index: 6, kind: input, shape index: {}]
  %s7 = inlined_call_operand.hbm [shape: bf16[2,64,128], index: 7, kind: output, shape index: {}]
  %s8 = sld [smem:[#allocation0]]
  $region61: #{tpu_custom_call.1} parent=0
    _
  %s10 = ssub.s32 1, %s8
  %s11 = scalar_select 0, %s10, %s8
  $region1: #{tpu_custom_call.1} parent=0
    #allocation2 [shape = 'u8[32768]{0}', space=vmem, size = 0x8000, scoped, tag = 'output window, operand 0']
    #allocation3 [shape = 's32[2]{0}', space=sflag, size = 0x8, scoped, tag = 'scoped memory for tpu_custom_call.1']
    %12 = vsyncpa [#allocation3], 0
    %s13 = scalar_lea.sflag [#allocation3], 1
    %14 = vsyncpa %s13, 0
    loop: start=0, step=1, limit=4
    $region2: #{tpu_custom_call.1} parent=1 // loop_pre_header
      _
    $region3: #{tpu_custom_call.1} parent=1 // loop_header
      %s16 = sphi 0, %s20
      %p17 = scmp.ge.s32.totalorder %s16, 4
      %s23 = sphi 0, %s35
      %s24 = sphi 0, %s31
      %s25 = sphi 0, %s23
      %s26 = sphi 0, %s24
      %s27 = sphi 0, %s25
      %s28 = sphi 0, %s26
      %s40 = sphi 0, %s42
      %s43 = sphi 0, %s40
      %s44 = sphi 0, %s43
      %s60 = sphi 0, %s44
      %s64 = sphi 0, %s64
      %s66 = sphi 0, %s64
      %s67 = sphi 0, %s66
      %s81 = sphi 0, %s67
      %s85 = sphi 0, %s85
      %s87 = sphi 0, %s85
      %s88 = sphi 0, %s87
      %s102 = sphi 0, %s88
      %s106 = sphi 0, %s106
      %s108 = sphi 0, %s106
      %s109 = sphi 0, %s108
      %s123 = sphi 0, %s109
      %s127 = sphi 0, %s127
      %s129 = sphi 0, %s127
      %s130 = sphi 0, %s129
      %s144 = sphi 0, %s130
      %s148 = sphi 0, %s148
      %s150 = sphi 0, %s148
      %s151 = sphi 0, %s150
      %s165 = sphi 0, %s151
      %s169 = sphi 0, %s169
      %s171 = sphi 0, %s169
      %s172 = sphi 0, %s171
      %s186 = sphi 0, %s172
      %s194 = sphi 0, %s196
      %s197 = sphi 0, %s194
      %s198 = sphi 0, %s197
      %s214 = sphi 0, %s198
    $region4: #{tpu_custom_call.1} parent=1 // loop_header_branch
      %19 = sbr.rel (%p17) target = $region8
    $region5: #{tpu_custom_call.1} parent=1 // loop_body
      %s21 = ssub.s32 %s16, 1
      %s22 = ssub.s32 %s16, 2
      %s29 = sadd.s32 1, %s24
      %p30 = scmp.ge.s32.totalorder %s29, 1
      %s31 = scalar_select %p30, 0, %s29
      %s32 = sadd.s32 1, %s23
      %s33 = scalar_select %p30, %s32, %s23
      %p34 = scmp.ge.s32.totalorder %s33, 2
      %s35 = scalar_select %p34, 0, %s33
      %s36 = ssub.s32 %s23, %s35
      %s37 = ssub.s32 %s24, %s31
      %s38 = sor.u32 %s36, %s37
      %p39 = scmp.eq.s32.totalorder %s38, 0
      %s41 = sadd.s32 %s40, 1
      %s42 = scalar_select %p39, %s40, %s41
      %p45 = pneg %p39
      %p46 = scmp.eq.s32.totalorder %s16, 1
      %p47 = por %p45, %p46
      %p48 = scmp.ne.s32.totalorder %s40, %s43
      %p49 = scmp.eq.s32.totalorder %s16, 0
      %p50 = por %p48, %p49
      %p51 = scmp.ne.s32.totalorder %s40, %s43
      %p52 = scmp.eq.s32.totalorder %s21, 1
      %p53 = por %p51, %p52
      %p54 = scmp.ne.s32.totalorder %s43, %s44
      %p55 = scmp.eq.s32.totalorder %s21, 0
      %p56 = por %p54, %p55
      %p57 = scmp.ne.s32.totalorder %s43, %s44
      %p58 = scmp.eq.s32.totalorder %s22, 1
      %p59 = por %p57, %p58
      %p61 = scmp.ne.s32.totalorder %s44, %s60
      %p62 = scmp.eq.s32.totalorder %s22, 0
      %p63 = por %p61, %p62
      %s65 = sadd.s32 %s64, 1
      %p68 = scmp.eq.s32.totalorder %s16, 1
      %p69 = scmp.ne.s32.totalorder %s64, %s66
      %p70 = scmp.eq.s32.totalorder %s16, 0
      %p71 = por %p69, %p70
      %p72 = scmp.ne.s32.totalorder %s64, %s66
      %p73 = scmp.eq.s32.totalorder %s21, 1
      %p74 = por %p72, %p73
      %p75 = scmp.ne.s32.totalorder %s66, %s67
      %p76 = scmp.eq.s32.totalorder %s21, 0
      %p77 = por %p75, %p76
      %p78 = scmp.ne.s32.totalorder %s66, %s67
      %p79 = scmp.eq.s32.totalorder %s22, 1
      %p80 = por %p78, %p79
      %p82 = scmp.ne.s32.totalorder %s67, %s81
      %p83 = scmp.eq.s32.totalorder %s22, 0
      %p84 = por %p82, %p83
      %s86 = sadd.s32 %s85, 1
      %p89 = scmp.eq.s32.totalorder %s16, 1
      %p90 = scmp.ne.s32.totalorder %s85, %s87
      %p91 = scmp.eq.s32.totalorder %s16, 0
      %p92 = por %p90, %p91
      %p93 = scmp.ne.s32.totalorder %s85, %s87
      %p94 = scmp.eq.s32.totalorder %s21, 1
      %p95 = por %p93, %p94
      %p96 = scmp.ne.s32.totalorder %s87, %s88
      %p97 = scmp.eq.s32.totalorder %s21, 0
      %p98 = por %p96, %p97
      %p99 = scmp.ne.s32.totalorder %s87, %s88
      %p100 = scmp.eq.s32.totalorder %s22, 1
      %p101 = por %p99, %p100
      %p103 = scmp.ne.s32.totalorder %s88, %s102
      %p104 = scmp.eq.s32.totalorder %s22, 0
      %p105 = por %p103, %p104
      %s107 = sadd.s32 %s106, 1
      %p110 = scmp.eq.s32.totalorder %s16, 1
      %p111 = scmp.ne.s32.totalorder %s106, %s108
      %p112 = scmp.eq.s32.totalorder %s16, 0
      %p113 = por %p111, %p112
      %p114 = scmp.ne.s32.totalorder %s106, %s108
      %p115 = scmp.eq.s32.totalorder %s21, 1
      %p116 = por %p114, %p115
      %p117 = scmp.ne.s32.totalorder %s108, %s109
      %p118 = scmp.eq.s32.totalorder %s21, 0
      %p119 = por %p117, %p118
      %p120 = scmp.ne.s32.totalorder %s108, %s109
      %p121 = scmp.eq.s32.totalorder %s22, 1
      %p122 = por %p120, %p121
      %p124 = scmp.ne.s32.totalorder %s109, %s123
      %p125 = scmp.eq.s32.totalorder %s22, 0
      %p126 = por %p124, %p125
      %s128 = sadd.s32 %s127, 1
      %p131 = scmp.eq.s32.totalorder %s16, 1
      %p132 = scmp.ne.s32.totalorder %s127, %s129
      %p133 = scmp.eq.s32.totalorder %s16, 0
      %p134 = por %p132, %p133
      %p135 = scmp.ne.s32.totalorder %s127, %s129
      %p136 = scmp.eq.s32.totalorder %s21, 1
      %p137 = por %p135, %p136
      %p138 = scmp.ne.s32.totalorder %s129, %s130
      %p139 = scmp.eq.s32.totalorder %s21, 0
      %p140 = por %p138, %p139
      %p141 = scmp.ne.s32.totalorder %s129, %s130
      %p142 = scmp.eq.s32.totalorder %s22, 1
      %p143 = por %p141, %p142
      %p145 = scmp.ne.s32.totalorder %s130, %s144
      %p146 = scmp.eq.s32.totalorder %s22, 0
      %p147 = por %p145, %p146
      %s149 = sadd.s32 %s148, 1
      %p152 = scmp.eq.s32.totalorder %s16, 1
      %p153 = scmp.ne.s32.totalorder %s148, %s150
      %p154 = scmp.eq.s32.totalorder %s16, 0
      %p155 = por %p153, %p154
      %p156 = scmp.ne.s32.totalorder %s148, %s150
      %p157 = scmp.eq.s32.totalorder %s21, 1
      %p158 = por %p156, %p157
      %p159 = scmp.ne.s32.totalorder %s150, %s151
      %p160 = scmp.eq.s32.totalorder %s21, 0
      %p161 = por %p159, %p160
      %p162 = scmp.ne.s32.totalorder %s150, %s151
      %p163 = scmp.eq.s32.totalorder %s22, 1
      %p164 = por %p162, %p163
      %p166 = scmp.ne.s32.totalorder %s151, %s165
      %p167 = scmp.eq.s32.totalorder %s22, 0
      %p168 = por %p166, %p167
      %s170 = sadd.s32 %s169, 1
      %p173 = scmp.eq.s32.totalorder %s16, 1
      %p174 = scmp.ne.s32.totalorder %s169, %s171
      %p175 = scmp.eq.s32.totalorder %s16, 0
      %p176 = por %p174, %p175
      %p177 = scmp.ne.s32.totalorder %s169, %s171
      %p178 = scmp.eq.s32.totalorder %s21, 1
      %p179 = por %p177, %p178
      %p180 = scmp.ne.s32.totalorder %s171, %s172
      %p181 = scmp.eq.s32.totalorder %s21, 0
      %p182 = por %p180, %p181
      %p183 = scmp.ne.s32.totalorder %s171, %s172
      %p184 = scmp.eq.s32.totalorder %s22, 1
      %p185 = por %p183, %p184
      %p187 = scmp.ne.s32.totalorder %s172, %s186
      %p188 = scmp.eq.s32.totalorder %s22, 0
      %p189 = por %p187, %p188
      %s190 = ssub.s32 %s23, %s35
      %s191 = ssub.s32 %s24, %s31
      %s192 = sor.u32 %s190, %s191
      %p193 = scmp.eq.s32.totalorder %s192, 0
      %s195 = sadd.s32 %s194, 1
      %s196 = scalar_select %p193, %s194, %s195
      %p199 = pneg %p193
      %p200 = scmp.eq.s32.totalorder %s16, 1
      %p201 = por %p199, %p200
      %p202 = scmp.ne.s32.totalorder %s194, %s197
      %p203 = scmp.eq.s32.totalorder %s16, 0
      %p204 = por %p202, %p203
      %p205 = scmp.ne.s32.totalorder %s194, %s197
      %p206 = scmp.eq.s32.totalorder %s21, 1
      %p207 = por %p205, %p206
      %p208 = scmp.ne.s32.totalorder %s197, %s198
      %p209 = scmp.eq.s32.totalorder %s21, 0
      %p210 = por %p208, %p209
      %p211 = scmp.ne.s32.totalorder %s197, %s198
      %p212 = scmp.eq.s32.totalorder %s22, 1
      %p213 = por %p211, %p212
      %p215 = scmp.ne.s32.totalorder %s198, %s214
      %p216 = scmp.eq.s32.totalorder %s22, 0
      %p217 = por %p215, %p216
      %p218 = scmp.le.s32.totalorder 1, %s16
      %p219 = scmp.lt.s32.totalorder %s16, 3
      %p220 = pnand %p218, %p219
      %p221 = pneg %p220
      // Predicated region
      $region9: #{tpu_custom_call.1} parent=5 // pred_check
        _
      $region10: #{tpu_custom_call.1} parent=5 // pred_check_branch
        %223 = sbr.rel (%p220) target = $region12
      $region11: #{tpu_custom_call.1} parent=5 // pred_region
        %s224 = ssub.s32 %s16, 1
        // Predicated region
        $region13: #{tpu_custom_call.1} parent=11 // pred_check
          %p225 = pneg %p77
        $region14: #{tpu_custom_call.1} parent=11 // pred_check_branch
          %227 = sbr.rel (%p225) target = $region16
        $region15: #{tpu_custom_call.1} parent=11 // pred_region
          _
        $region16: #{tpu_custom_call.1} parent=11 // pred_fallthru
          _
        // Predicated region
        $region17: #{tpu_custom_call.1} parent=11 // pred_check
          %p228 = pneg %p98
        $region18: #{tpu_custom_call.1} parent=11 // pred_check_branch
          %230 = sbr.rel (%p228) target = $region20
        $region19: #{tpu_custom_call.1} parent=11 // pred_region
          _
        $region20: #{tpu_custom_call.1} parent=11 // pred_fallthru
          _
        // Predicated region
        $region21: #{tpu_custom_call.1} parent=11 // pred_check
          %p231 = pneg %p119
        $region22: #{tpu_custom_call.1} parent=11 // pred_check_branch
          %233 = sbr.rel (%p231) target = $region24
        $region23: #{tpu_custom_call.1} parent=11 // pred_region
          _
        $region24: #{tpu_custom_call.1} parent=11 // pred_fallthru
          _
        // Predicated region
        $region25: #{tpu_custom_call.1} parent=11 // pred_check
          %p234 = pneg %p140
        $region26: #{tpu_custom_call.1} parent=11 // pred_check_branch
          %236 = sbr.rel (%p234) target = $region28
        $region27: #{tpu_custom_call.1} parent=11 // pred_region
          _
        $region28: #{tpu_custom_call.1} parent=11 // pred_fallthru
          _
        // Predicated region
        $region29: #{tpu_custom_call.1} parent=11 // pred_check
          %p237 = pneg %p161
        $region30: #{tpu_custom_call.1} parent=11 // pred_check_branch
          %239 = sbr.rel (%p237) target = $region32
        $region31: #{tpu_custom_call.1} parent=11 // pred_region
          _
        $region32: #{tpu_custom_call.1} parent=11 // pred_fallthru
          _
        // Predicated region
        $region33: #{tpu_custom_call.1} parent=11 // pred_check
          %p240 = pneg %p182
        $region34: #{tpu_custom_call.1} parent=11 // pred_check_branch
          %242 = sbr.rel (%p240) target = $region36
        $region35: #{tpu_custom_call.1} parent=11 // pred_region
          _
        $region36: #{tpu_custom_call.1} parent=11 // pred_fallthru
          _
      $region12: #{tpu_custom_call.1} parent=5 // pred_fallthru
        _
      %p243 = scmp.lt.s32.totalorder %s16, 2
      // Predicated region
      $region37: #{tpu_custom_call.1} parent=5 // pred_check
        %p244 = pneg %p243
      $region38: #{tpu_custom_call.1} parent=5 // pred_check_branch
        %246 = sbr.rel (%p244) target = $region40
      $region39: #{tpu_custom_call.1} parent=5 // pred_region
        // Predicated region
        $region41: #{tpu_custom_call.1} parent=39 // pred_check
          %p247 = pneg %p50
        $region42: #{tpu_custom_call.1} parent=39 // pred_check_branch
          %249 = sbr.rel (%p247) target = $region44
        $region43: #{tpu_custom_call.1} parent=39 // pred_region
          %p250 = scmp.lt.s32.totalorder %s23, 1
          %s251 = scalar_select %p250, %s23, 1
          %p252 = scmp.lt.s32.totalorder %s24, 0
          %s253 = scalar_select %p252, %s24, 0
          %s254 = smul.addr %s251, 16
          %s255 = sadd.s32 %s253, %s254
          %s256 = smul.addr %s255, 8
          %s257 = scalar_lea.vmem %s0, %s256
        $region44: #{tpu_custom_call.1} parent=39 // pred_fallthru
          _
      $region40: #{tpu_custom_call.1} parent=5 // pred_fallthru
        _
      %p258 = scmp.le.s32.totalorder 1, %s16
      %p259 = scmp.lt.s32.totalorder %s16, 3
      %p260 = pnand %p258, %p259
      %p261 = pneg %p260
      // Predicated region
      $region45: #{tpu_custom_call.1} parent=5 // pred_check
        _
      $region46: #{tpu_custom_call.1} parent=5 // pred_check_branch
        %263 = sbr.rel (%p260) target = $region48
      $region47: #{tpu_custom_call.1} parent=5 // pred_region
        %s264 = ssub.s32 %s16, 1
        %p265 = scmp.lt.s32.totalorder %s25, 1
        %s266 = scalar_select %p265, %s25, 1
        %p267 = scmp.lt.s32.totalorder %s26, 0
        %s268 = scalar_select %p267, %s26, 0
        %s269 = smul.addr %s266, 16
        %s270 = sadd.s32 %s268, %s269
        %s271 = smul.addr %s270, 8
        %s272 = scalar_lea.vmem %s0, %s271
        %p273 = pneg %p56
        %p274 = pneg %p53
        %p275 = pneg %p77
        %p276 = pneg %p74
        %p277 = pneg %p98
        %p278 = pneg %p95
        %p279 = pneg %p119
        %p280 = pneg %p116
        %p281 = pneg %p140
        %p282 = pneg %p137
        %p283 = pneg %p161
        %p284 = pneg %p158
        %p285 = pneg %p182
        %p286 = pneg %p179
        %p287 = pneg %p210
        %p288 = pneg %p207
        %s289 = sand.u32 %s197, 1
        %s290 = scalar_lea.sflag [#allocation3], %s289
        %s291 = sand.u32 %s197, 1
        %s292 = smul.addr %s291, 32
        %s293 = scalar_lea.vmem [#allocation2], %s292
        %p294 = scmp.lt.s32.totalorder %s25, 1
        %s295 = scalar_select %p294, %s25, 1
        %p296 = scmp.lt.s32.totalorder %s26, 0
        %s297 = scalar_select %p296, %s26, 0
        %s298 = smul.addr %s295, 16
        %s299 = sadd.s32 %s297, %s298
        %s300 = smul.addr %s299, 8
        %s301 = scalar_lea.vmem %s0, %s300
        %s302 = smul.u32 8, %s26
        %v304 = vld [vmem:[%s301] sm:$0xff]
        %v305 = vld [vmem:[%s301 + $0x8] sm:$0xff]
        %v306 = vld [vmem:[%s301 + $0x10] sm:$0xff]
        %v307 = vld [vmem:[%s301 + $0x18] sm:$0xff]
        %v308 = vld [vmem:[%s301 + $0x20] sm:$0xff]
        %v309 = vld [vmem:[%s301 + $0x28] sm:$0xff]
        %v310 = vld [vmem:[%s301 + $0x30] sm:$0xff]
        %v311 = vld [vmem:[%s301 + $0x38] sm:$0xff]
        %v312 = vld [vmem:[%s301 + $0x40] sm:$0xff]
        %v313 = vld [vmem:[%s301 + $0x48] sm:$0xff]
        %v314 = vld [vmem:[%s301 + $0x50] sm:$0xff]
        %v315 = vld [vmem:[%s301 + $0x58] sm:$0xff]
        %v316 = vld [vmem:[%s301 + $0x60] sm:$0xff]
        %v317 = vld [vmem:[%s301 + $0x68] sm:$0xff]
        %v318 = vld [vmem:[%s301 + $0x70] sm:$0xff]
        %v319 = vld [vmem:[%s301 + $0x78] sm:$0xff]
        %v320 = vpack.c.bf16 %v305, %v304
        %v321 = vpack.c.bf16 %v307, %v306
        %v322 = vpack.c.bf16 %v309, %v308
        %v323 = vpack.c.bf16 %v311, %v310
        %v324 = vpack.c.bf16 %v313, %v312
        %v325 = vpack.c.bf16 %v315, %v314
        %v326 = vpack.c.bf16 %v317, %v316
        %v327 = vpack.c.bf16 %v319, %v318
        %v328 = vld [vmem:[%s1] sm:$0xf]
        %v329 = vld [vmem:[%s1 + $0x4] sm:$0xf]
        %v330 = vld [vmem:[%s1 + $0x8] sm:$0xf]
        %v331 = vld [vmem:[%s1 + $0xc] sm:$0xf]
        %v332 = vld [vmem:[%s1 + $0x10] sm:$0xf]
        %v333 = vld [vmem:[%s1 + $0x14] sm:$0xf]
        %v334 = vld [vmem:[%s1 + $0x18] sm:$0xf]
        %v335 = vld [vmem:[%s1 + $0x1c] sm:$0xf]
        %v336 = vld [vmem:[%s1 + $0x20] sm:$0xf]
        %v337 = vld [vmem:[%s1 + $0x24] sm:$0xf]
        %v338 = vld [vmem:[%s1 + $0x28] sm:$0xf]
        %v339 = vld [vmem:[%s1 + $0x2c] sm:$0xf]
        %v340 = vld [vmem:[%s1 + $0x30] sm:$0xf]
        %v341 = vld [vmem:[%s1 + $0x34] sm:$0xf]
        %v342 = vld [vmem:[%s1 + $0x38] sm:$0xf]
        %v343 = vld [vmem:[%s1 + $0x3c] sm:$0xf]
        %v344 = vld [vmem:[%s2] sm:$0x1]
        %v346 = vlaneseq
        %v347 = vshrl.u32 %v346, 7
        %v348 = vsub.s32 0, %v347
        %v349 = vrot.slane %v344, %v348
        %351 = vxpose.xlu0.c.b16.start [1/8] %v320, 128
        %352 = vxpose.xlu0.c.b16.cont [2/8] %v321, 128
        %353 = vxpose.xlu0.c.b16.cont [3/8] %v322, 128
        %354 = vxpose.xlu0.c.b16.cont [4/8] %v323, 128
        %355 = vxpose.xlu0.c.b16.cont [5/8] %v324, 128
        %356 = vxpose.xlu0.c.b16.cont [6/8] %v325, 128
        %357 = vxpose.xlu0.c.b16.cont [7/8] %v326, 128
        %358 = vxpose.xlu0.c.b16.end [8/8] %v327, 128
        %v359 = vpop.trf.xlu0
        %v360 = vpop.trf.xlu0
        %v361 = vpop.trf.xlu0
        %v362 = vpop.trf.xlu0
        %v363 = vpop.trf.xlu0
        %v364 = vpop.trf.xlu0
        %v365 = vpop.trf.xlu0
        %v366 = vpop.trf.xlu0
        %v383 = vunpack.c.l.b16 %v328
        %v384 = vunpack.c.l.b16 %v329
        %v385 = vunpack.c.l.b16 %v330
        %v386 = vunpack.c.l.b16 %v331
        %v387 = vunpack.c.l.b16 %v332
        %v388 = vunpack.c.l.b16 %v333
        %v389 = vunpack.c.l.b16 %v334
        %v390 = vunpack.c.l.b16 %v335
        %v391 = vunpack.c.l.b16 %v336
        %v392 = vunpack.c.l.b16 %v337
        %v393 = vunpack.c.l.b16 %v338
        %v394 = vunpack.c.l.b16 %v339
        %v395 = vunpack.c.l.b16 %v340
        %v396 = vunpack.c.l.b16 %v341
        %v397 = vunpack.c.l.b16 %v342
        %v398 = vunpack.c.l.b16 %v343
        %v399 = vpack.c.b16 %v384, %v383
        %v400 = vpack.c.b16 %v386, %v385
        %v401 = vpack.c.b16 %v388, %v387
        %v402 = vpack.c.b16 %v390, %v389
        %v403 = vpack.c.b16 %v392, %v391
        %v404 = vpack.c.b16 %v394, %v393
        %v405 = vpack.c.b16 %v396, %v395
        %v406 = vpack.c.b16 %v398, %v397
        %415 = vmatprep.subr.bf16.mxu0 0
        %416 = vmatpush1.bf16.msra.mxu0 %v399
        %417 = vmatprep.subr.bf16.mxu0 0
        %418 = vmatpush1.bf16.msra.mxu0 %v400
        %419 = vmatprep.subr.bf16.mxu0 0
        %420 = vmatpush1.bf16.msra.mxu0 %v401
        %421 = vmatprep.subr.bf16.mxu0 0
        %422 = vmatpush1.bf16.msra.mxu0 %v402
        %423 = vmatprep.subr.bf16.mxu0 0
        %424 = vmatpush1.bf16.msra.mxu0 %v403
        %425 = vmatprep.subr.bf16.mxu0 0
        %426 = vmatpush1.bf16.msra.mxu0 %v404
        %427 = vmatprep.subr.bf16.mxu0 0
        %428 = vmatpush1.bf16.msra.mxu0 %v405
        %429 = vmatprep.subr.bf16.mxu0 0
        %430 = vmatpush1.bf16.msra.mxu0 %v406
        %431 = vmatprep.subr.bf16.mxu0 0
        %432 = vmatpush1.bf16.msra.mxu0 0
        %433 = vmatprep.subr.bf16.mxu0 0
        %434 = vmatpush1.bf16.msra.mxu0 0
        %435 = vmatprep.subr.bf16.mxu0 0
        %436 = vmatpush1.bf16.msra.mxu0 0
        %437 = vmatprep.subr.bf16.mxu0 0
        %438 = vmatpush1.bf16.msra.mxu0 0
        %439 = vmatprep.subr.bf16.mxu0 0
        %440 = vmatpush1.bf16.msra.mxu0 0
        %441 = vmatprep.subr.bf16.mxu0 0
        %442 = vmatpush1.bf16.msra.mxu0 0
        %443 = vmatprep.subr.bf16.mxu0 0
        %444 = vmatpush1.bf16.msra.mxu0 0
        %445 = vmatprep.subr.bf16.mxu0 0
        %446 = vmatpush1.bf16.msra.mxu0 0
        %447 = vmatprep.mubr.bf16.mxu0 0
        %448 = vmatmul.mubr.bf16.gmra.mrb[0].mxu0 %v359
        %v449 = vpop.f32.mrb[0].mxu0
        %v450 = vadd.f32 %v349, %v449
        %v451 = vpop.f32.mrb[0].mxu0
        %v452 = vpop.f32.mrb[0].mxu0
        %v453 = vadd.f32 %v349, %v452
        %v454 = vpop.f32.mrb[0].mxu0
        %455 = vmatprep.mubr.bf16.mxu0 0
        %456 = vmatmul.mubr.bf16.gmra.mrb[0].mxu0 %v360
        %v457 = vpop.f32.mrb[0].mxu0
        %v458 = vadd.f32 %v349, %v457
        %v459 = vpop.f32.mrb[0].mxu0
        %v460 = vpop.f32.mrb[0].mxu0
        %v461 = vadd.f32 %v349, %v460
        %v462 = vpop.f32.mrb[0].mxu0
        %463 = vmatprep.mubr.bf16.mxu0 0
        %464 = vmatmul.mubr.bf16.gmra.mrb[0].mxu0 %v361
        %v465 = vpop.f32.mrb[0].mxu0
        %v466 = vadd.f32 %v349, %v465
        %v467 = vpop.f32.mrb[0].mxu0
        %v468 = vpop.f32.mrb[0].mxu0
        %v469 = vadd.f32 %v349, %v468
        %v470 = vpop.f32.mrb[0].mxu0
        %471 = vmatprep.mubr.bf16.mxu0 0
        %472 = vmatmul.mubr.bf16.gmra.mrb[0].mxu0 %v362
        %v473 = vpop.f32.mrb[0].mxu0
        %v474 = vadd.f32 %v349, %v473
        %v475 = vpop.f32.mrb[0].mxu0
        %v476 = vpop.f32.mrb[0].mxu0
        %v477 = vadd.f32 %v349, %v476
        %v478 = vpop.f32.mrb[0].mxu0
        %479 = vdwg.mxu0
        %v480 = vmax.f32 %v450, 0.0
        %v481 = vmax.f32 %v453, 0.0
        %v482 = vmax.f32 %v458, 0.0
        %v483 = vmax.f32 %v461, 0.0
        %v484 = vmax.f32 %v466, 0.0
        %v485 = vmax.f32 %v469, 0.0
        %v486 = vmax.f32 %v474, 0.0
        %v487 = vmax.f32 %v477, 0.0
        %v488 = vpack.c.bf16 %v481, %v480
        %v489 = vpack.c.bf16 %v483, %v482
        %v490 = vpack.c.bf16 %v485, %v484
        %v491 = vpack.c.bf16 %v487, %v486
        %v492 = vld [vmem:[%s3] sm:$0xf]
        %v493 = vld [vmem:[%s3 + $0x4] sm:$0xf]
        %v494 = vld [vmem:[%s3 + $0x8] sm:$0xf]
        %v495 = vld [vmem:[%s3 + $0xc] sm:$0xf]
        %v496 = vld [vmem:[%s3 + $0x10] sm:$0xf]
        %v497 = vld [vmem:[%s3 + $0x14] sm:$0xf]
        %v498 = vld [vmem:[%s3 + $0x18] sm:$0xf]
        %v499 = vld [vmem:[%s3 + $0x1c] sm:$0xf]
        %v500 = vld [vmem:[%s3 + $0x20] sm:$0xf]
        %v501 = vld [vmem:[%s3 + $0x24] sm:$0xf]
        %v502 = vld [vmem:[%s3 + $0x28] sm:$0xf]
        %v503 = vld [vmem:[%s3 + $0x2c] sm:$0xf]
        %v504 = vld [vmem:[%s3 + $0x30] sm:$0xf]
        %v505 = vld [vmem:[%s3 + $0x34] sm:$0xf]
        %v506 = vld [vmem:[%s3 + $0x38] sm:$0xf]
        %v507 = vld [vmem:[%s3 + $0x3c] sm:$0xf]
        %v508 = vld [vmem:[%s4] sm:$0x1]
        %v510 = vlaneseq
        %v511 = vshrl.u32 %v510, 7
        %v512 = vsub.s32 0, %v511
        %v513 = vrot.slane %v508, %v512
        %v531 = vunpack.c.l.b16 %v492
        %v532 = vunpack.c.l.b16 %v493
        %v533 = vunpack.c.l.b16 %v494
        %v534 = vunpack.c.l.b16 %v495
        %v535 = vunpack.c.l.b16 %v496
        %v536 = vunpack.c.l.b16 %v497
        %v537 = vunpack.c.l.b16 %v498
        %v538 = vunpack.c.l.b16 %v499
        %v539 = vunpack.c.l.b16 %v500
        %v540 = vunpack.c.l.b16 %v501
        %v541 = vunpack.c.l.b16 %v502
        %v542 = vunpack.c.l.b16 %v503
        %v543 = vunpack.c.l.b16 %v504
        %v544 = vunpack.c.l.b16 %v505
        %v545 = vunpack.c.l.b16 %v506
        %v546 = vunpack.c.l.b16 %v507
        %v547 = vpack.c.b16 %v532, %v531
        %v548 = vpack.c.b16 %v534, %v533
        %v549 = vpack.c.b16 %v536, %v535
        %v550 = vpack.c.b16 %v538, %v537
        %v551 = vpack.c.b16 %v540, %v539
        %v552 = vpack.c.b16 %v542, %v541
        %v553 = vpack.c.b16 %v544, %v543
        %v554 = vpack.c.b16 %v546, %v545
        %563 = vmatprep.subr.bf16.mxu0 0
        %564 = vmatpush1.bf16.msra.mxu0 %v547
        %565 = vmatprep.subr.bf16.mxu0 0
        %566 = vmatpush1.bf16.msra.mxu0 %v548
        %567 = vmatprep.subr.bf16.mxu0 0
        %568 = vmatpush1.bf16.msra.mxu0 %v549
        %569 = vmatprep.subr.bf16.mxu0 0
        %570 = vmatpush1.bf16.msra.mxu0 %v550
        %571 = vmatprep.subr.bf16.mxu0 0
        %572 = vmatpush1.bf16.msra.mxu0 %v551
        %573 = vmatprep.subr.bf16.mxu0 0
        %574 = vmatpush1.bf16.msra.mxu0 %v552
        %575 = vmatprep.subr.bf16.mxu0 0
        %576 = vmatpush1.bf16.msra.mxu0 %v553
        %577 = vmatprep.subr.bf16.mxu0 0
        %578 = vmatpush1.bf16.msra.mxu0 %v554
        %579 = vmatprep.subr.bf16.mxu0 0
        %580 = vmatpush1.bf16.msra.mxu0 0
        %581 = vmatprep.subr.bf16.mxu0 0
        %582 = vmatpush1.bf16.msra.mxu0 0
        %583 = vmatprep.subr.bf16.mxu0 0
        %584 = vmatpush1.bf16.msra.mxu0 0
        %585 = vmatprep.subr.bf16.mxu0 0
        %586 = vmatpush1.bf16.msra.mxu0 0
        %587 = vmatprep.subr.bf16.mxu0 0
        %588 = vmatpush1.bf16.msra.mxu0 0
        %589 = vmatprep.subr.bf16.mxu0 0
        %590 = vmatpush1.bf16.msra.mxu0 0
        %591 = vmatprep.subr.bf16.mxu0 0
        %592 = vmatpush1.bf16.msra.mxu0 0
        %593 = vmatprep.subr.bf16.mxu0 0
        %594 = vmatpush1.bf16.msra.mxu0 0
        %595 = vmatprep.mubr.bf16.mxu0 0
        %596 = vmatmul.mubr.bf16.gmra.mrb[0].mxu0 %v488
        %v597 = vpop.f32.mrb[0].mxu0
        %v598 = vadd.f32 %v513, %v597
        %v599 = vpop.f32.mrb[0].mxu0
        %v600 = vpop.f32.mrb[0].mxu0
        %v601 = vadd.f32 %v513, %v600
        %v602 = vpop.f32.mrb[0].mxu0
        %603 = vmatprep.mubr.bf16.mxu0 0
        %604 = vmatmul.mubr.bf16.gmra.mrb[0].mxu0 %v489
        %v605 = vpop.f32.mrb[0].mxu0
        %v606 = vadd.f32 %v513, %v605
        %v607 = vpop.f32.mrb[0].mxu0
        %v608 = vpop.f32.mrb[0].mxu0
        %v609 = vadd.f32 %v513, %v608
        %v610 = vpop.f32.mrb[0].mxu0
        %611 = vmatprep.mubr.bf16.mxu0 0
        %612 = vmatmul.mubr.bf16.gmra.mrb[0].mxu0 %v490
        %v613 = vpop.f32.mrb[0].mxu0
        %v614 = vadd.f32 %v513, %v613
        %v615 = vpop.f32.mrb[0].mxu0
        %v616 = vpop.f32.mrb[0].mxu0
        %v617 = vadd.f32 %v513, %v616
        %v618 = vpop.f32.mrb[0].mxu0
        %619 = vmatprep.mubr.bf16.mxu0 0
        %620 = vmatmul.mubr.bf16.gmra.mrb[0].mxu0 %v491
        %v621 = vpop.f32.mrb[0].mxu0
        %v622 = vadd.f32 %v513, %v621
        %v623 = vpop.f32.mrb[0].mxu0
        %v624 = vpop.f32.mrb[0].mxu0
        %v625 = vadd.f32 %v513, %v624
        %v626 = vpop.f32.mrb[0].mxu0
        %627 = vdwg.mxu0
        %v628 = vmax.f32 %v598, 0.0
        %v629 = vmax.f32 %v601, 0.0
        %v630 = vmax.f32 %v606, 0.0
        %v631 = vmax.f32 %v609, 0.0
        %v632 = vmax.f32 %v614, 0.0
        %v633 = vmax.f32 %v617, 0.0
        %v634 = vmax.f32 %v622, 0.0
        %v635 = vmax.f32 %v625, 0.0
        %v636 = vpack.c.bf16 %v629, %v628
        %v637 = vpack.c.bf16 %v631, %v630
        %v638 = vpack.c.bf16 %v633, %v632
        %v639 = vpack.c.bf16 %v635, %v634
        %v640 = vld [vmem:[%s5] sm:$0xf]
        %v641 = vld [vmem:[%s5 + $0x4] sm:$0xf]
        %v642 = vld [vmem:[%s5 + $0x8] sm:$0xf]
        %v643 = vld [vmem:[%s5 + $0xc] sm:$0xf]
        %v644 = vld [vmem:[%s5 + $0x10] sm:$0xf]
        %v645 = vld [vmem:[%s5 + $0x14] sm:$0xf]
        %v646 = vld [vmem:[%s5 + $0x18] sm:$0xf]
        %v647 = vld [vmem:[%s5 + $0x1c] sm:$0xf]
        %v648 = vld [vmem:[%s5 + $0x20] sm:$0xf]
        %v649 = vld [vmem:[%s5 + $0x24] sm:$0xf]
        %v650 = vld [vmem:[%s5 + $0x28] sm:$0xf]
        %v651 = vld [vmem:[%s5 + $0x2c] sm:$0xf]
        %v652 = vld [vmem:[%s5 + $0x30] sm:$0xf]
        %v653 = vld [vmem:[%s5 + $0x34] sm:$0xf]
        %v654 = vld [vmem:[%s5 + $0x38] sm:$0xf]
        %v655 = vld [vmem:[%s5 + $0x3c] sm:$0xf]
        %v656 = vld [vmem:[%s6] sm:$0x1]
        %v658 = vlaneseq
        %v659 = vshrl.u32 %v658, 7
        %v660 = vsub.s32 0, %v659
        %v661 = vrot.slane %v656, %v660
        %v679 = vunpack.c.l.b16 %v640
        %v680 = vunpack.c.l.b16 %v641
        %v681 = vunpack.c.l.b16 %v642
        %v682 = vunpack.c.l.b16 %v643
        %v683 = vunpack.c.l.b16 %v644
        %v684 = vunpack.c.l.b16 %v645
        %v685 = vunpack.c.l.b16 %v646
        %v686 = vunpack.c.l.b16 %v647
        %v687 = vunpack.c.l.b16 %v648
        %v688 = vunpack.c.l.b16 %v649
        %v689 = vunpack.c.l.b16 %v650
        %v690 = vunpack.c.l.b16 %v651
        %v691 = vunpack.c.l.b16 %v652
        %v692 = vunpack.c.l.b16 %v653
        %v693 = vunpack.c.l.b16 %v654
        %v694 = vunpack.c.l.b16 %v655
        %v695 = vpack.c.b16 %v680, %v679
        %v696 = vpack.c.b16 %v682, %v681
        %v697 = vpack.c.b16 %v684, %v683
        %v698 = vpack.c.b16 %v686, %v685
        %v699 = vpack.c.b16 %v688, %v687
        %v700 = vpack.c.b16 %v690, %v689
        %v701 = vpack.c.b16 %v692, %v691
        %v702 = vpack.c.b16 %v694, %v693
        %711 = vmatprep.subr.bf16.mxu0 0
        %712 = vmatpush1.bf16.msra.mxu0 %v695
        %713 = vmatprep.subr.bf16.mxu0 0
        %714 = vmatpush1.bf16.msra.mxu0 %v696
        %715 = vmatprep.subr.bf16.mxu0 0
        %716 = vmatpush1.bf16.msra.mxu0 %v697
        %717 = vmatprep.subr.bf16.mxu0 0
        %718 = vmatpush1.bf16.msra.mxu0 %v698
        %719 = vmatprep.subr.bf16.mxu0 0
        %720 = vmatpush1.bf16.msra.mxu0 %v699
        %721 = vmatprep.subr.bf16.mxu0 0
        %722 = vmatpush1.bf16.msra.mxu0 %v700
        %723 = vmatprep.subr.bf16.mxu0 0
        %724 = vmatpush1.bf16.msra.mxu0 %v701
        %725 = vmatprep.subr.bf16.mxu0 0
        %726 = vmatpush1.bf16.msra.mxu0 %v702
        %727 = vmatprep.subr.bf16.mxu0 0
        %728 = vmatpush1.bf16.msra.mxu0 0
        %729 = vmatprep.subr.bf16.mxu0 0
        %730 = vmatpush1.bf16.msra.mxu0 0
        %731 = vmatprep.subr.bf16.mxu0 0
        %732 = vmatpush1.bf16.msra.mxu0 0
        %733 = vmatprep.subr.bf16.mxu0 0
        %734 = vmatpush1.bf16.msra.mxu0 0
        %735 = vmatprep.subr.bf16.mxu0 0
        %736 = vmatpush1.bf16.msra.mxu0 0
        %737 = vmatprep.subr.bf16.mxu0 0
        %738 = vmatpush1.bf16.msra.mxu0 0
        %739 = vmatprep.subr.bf16.mxu0 0
        %740 = vmatpush1.bf16.msra.mxu0 0
        %741 = vmatprep.subr.bf16.mxu0 0
        %742 = vmatpush1.bf16.msra.mxu0 0
        %743 = vmatprep.mubr.bf16.mxu0 0
        %744 = vmatmul.mubr.bf16.gmra.mrb[0].mxu0 %v636
        %v745 = vpop.f32.mrb[0].mxu0
        %v746 = vadd.f32 %v661, %v745
        %v747 = vpop.f32.mrb[0].mxu0
        %v748 = vpop.f32.mrb[0].mxu0
        %v749 = vadd.f32 %v661, %v748
        %v750 = vpop.f32.mrb[0].mxu0
        %751 = vmatprep.mubr.bf16.mxu0 0
        %752 = vmatmul.mubr.bf16.gmra.mrb[0].mxu0 %v637
        %v753 = vpop.f32.mrb[0].mxu0
        %v754 = vadd.f32 %v661, %v753
        %v755 = vpop.f32.mrb[0].mxu0
        %v756 = vpop.f32.mrb[0].mxu0
        %v757 = vadd.f32 %v661, %v756
        %v758 = vpop.f32.mrb[0].mxu0
        %759 = vmatprep.mubr.bf16.mxu0 0
        %760 = vmatmul.mubr.bf16.gmra.mrb[0].mxu0 %v638
        %v761 = vpop.f32.mrb[0].mxu0
        %v762 = vadd.f32 %v661, %v761
        %v763 = vpop.f32.mrb[0].mxu0
        %v764 = vpop.f32.mrb[0].mxu0
        %v765 = vadd.f32 %v661, %v764
        %v766 = vpop.f32.mrb[0].mxu0
        %767 = vmatprep.mubr.bf16.mxu0 0
        %768 = vmatmul.mubr.bf16.gmra.mrb[0].mxu0 %v639
        %v769 = vpop.f32.mrb[0].mxu0
        %v770 = vadd.f32 %v661, %v769
        %v771 = vpop.f32.mrb[0].mxu0
        %v772 = vpop.f32.mrb[0].mxu0
        %v773 = vadd.f32 %v661, %v772
        %v774 = vpop.f32.mrb[0].mxu0
        %775 = vdwg.mxu0
        %v776 = vpack.c.bf16 %v749, %v746
        %v777 = vpack.c.bf16 %v757, %v754
        %v778 = vpack.c.bf16 %v765, %v762
        %v779 = vpack.c.bf16 %v773, %v770
        %v784 = vunpack.c.l.b16 %v776
        %v785 = vunpack.c.h.b16 %v776
        %v786 = vunpack.c.l.b16 %v777
        %v787 = vunpack.c.h.b16 %v777
        %v788 = vunpack.c.l.b16 %v778
        %v789 = vunpack.c.h.b16 %v778
        %v790 = vunpack.c.l.b16 %v779
        %v791 = vunpack.c.h.b16 %v779
        %v792 = vpack.c.b16 %v784, %v784
        %v793 = vpack.c.b16 %v785, %v785
        %v794 = vpack.c.b16 %v786, %v786
        %v795 = vpack.c.b16 %v787, %v787
        %v796 = vpack.c.b16 %v788, %v788
        %v797 = vpack.c.b16 %v789, %v789
        %v798 = vpack.c.b16 %v790, %v790
        %v799 = vpack.c.b16 %v791, %v791
        %808 = vst [vmem:[%s293] sm:$0xf] %v792
        %809 = vst [vmem:[%s293 + $0x4] sm:$0xf] %v793
        %810 = vst [vmem:[%s293 + $0x8] sm:$0xf] %v794
        %811 = vst [vmem:[%s293 + $0xc] sm:$0xf] %v795
        %812 = vst [vmem:[%s293 + $0x10] sm:$0xf] %v796
        %813 = vst [vmem:[%s293 + $0x14] sm:$0xf] %v797
        %814 = vst [vmem:[%s293 + $0x18] sm:$0xf] %v798
        %815 = vst [vmem:[%s293 + $0x1c] sm:$0xf] %v799
        %s816 = sand.u32 %s197, 1
        %s817 = scalar_lea.sflag [#allocation3], %s816
        %s818 = sand.u32 %s197, 1
        %s819 = smul.addr %s818, 32
        %s820 = scalar_lea.vmem [#allocation2], %s819
        // Predicated region
        $region49: #{tpu_custom_call.1} parent=47 // pred_check
          %p821 = pneg %p207
        $region50: #{tpu_custom_call.1} parent=47 // pred_check_branch
          %823 = sbr.rel (%p821) target = $region52
        $region51: #{tpu_custom_call.1} parent=47 // pred_region
          %s824 = smul.u32 8, %s26
          %s826 = ssub.s32 512, 512
          %827 = vsyncadd %s817, %s826
          %s828 = smul.addr %s25, 8
          %s829 = sadd.s32 %s824, %s828
          %s830 = smul.addr %s829, 64
          %s831 = scalar_lea.hbm %s7, %s830
          %s832 = sshll.u32 %s820, 4
          %s833 = int_to_ptr.vmem [resolvable:$true] %s832
          %838 = dma.vmem_to_hbm [thread:$0]  %s833, 512, %s831, %s817, 64, 64, 4
        $region52: #{tpu_custom_call.1} parent=47 // pred_fallthru
          _
      $region48: #{tpu_custom_call.1} parent=5 // pred_fallthru
        _
      %p839 = scmp.le.s32.totalorder 2, %s16
      // Predicated region
      $region53: #{tpu_custom_call.1} parent=5 // pred_check
        %p840 = pneg %p839
      $region54: #{tpu_custom_call.1} parent=5 // pred_check_branch
        %842 = sbr.rel (%p840) target = $region56
      $region55: #{tpu_custom_call.1} parent=5 // pred_region
        %s843 = ssub.s32 %s16, 2
        // Predicated region
        $region57: #{tpu_custom_call.1} parent=55 // pred_check
          %p844 = pneg %p213
        $region58: #{tpu_custom_call.1} parent=55 // pred_check_branch
          %846 = sbr.rel (%p844) target = $region60
        $region59: #{tpu_custom_call.1} parent=55 // pred_region
          %s847 = sand.u32 %s198, 1
          %s848 = scalar_lea.sflag [#allocation3], %s847
          %s849 = sand.u32 %s198, 1
          %s850 = smul.addr %s849, 32
          %s851 = scalar_lea.vmem [#allocation2], %s850
          %852 = dma.done %s848, 512
        $region60: #{tpu_custom_call.1} parent=55 // pred_fallthru
          _
      $region56: #{tpu_custom_call.1} parent=5 // pred_fallthru
        _
    $region6: #{tpu_custom_call.1} parent=1 // loop_footer
      %s20 = sadd.s32 1, %s16
    $region7: #{tpu_custom_call.1} parent=1 // loop_footer_branch
      %15 = sbr.rel target = $region3
    $region8: #{tpu_custom_call.1} parent=1 // loop_exit
      _
    %853 = vsyncpa [#allocation3], 1
    %s854 = scalar_lea.sflag [#allocation3], 1
    %855 = vsyncpa %s854, 1

</llo_original>
